<compile_context>
chip_gen: v7x
topology: tpu7x:2x2x1
jax: 0.10.0
libtpu: 0.0.40
codegen_flags: <defaults>
</compile_context>

<pallas_src>
import functools

import numpy as np
import jax
import jax.numpy as jnp
from jax.experimental import pallas as pl
from jax.experimental.pallas import tpu as pltpu


def _identity_kernel(x_ref, o_ref):
    # The whole forward pass: parameter "assignment" == identity on the data.
    o_ref[...] = x_ref[...]


def _sublane_multiple(dtype) -> int:
    """Minimum sublane tile multiple for the dtype (packed sub-32-bit dtypes)."""
    itemsize = np.dtype(dtype).itemsize
    if itemsize >= 4:
        return 8          # f32 / i32
    if itemsize == 2:
        return 16         # bf16 / f16 / i16
    return 32             # i8 / fp8


def _choose_tiling(total: int, dtype):
    """Pick (lanes, rows, tile_rows) for a lane-dense 2-D view of `total` elems."""
    itemsize = np.dtype(dtype).itemsize
    sub = _sublane_multiple(dtype)

    # Widest lane dimension (multiple of 128, <= 2048) that divides the element
    # count: longer contiguous DMA rows, fewer/fatter unmasked vld/vst.
    lanes = 128
    for w in (2048, 1024, 512, 256, 128):
        if total % w == 0:
            lanes = w
            break
    rows = total // lanes

    total_bytes = total * itemsize
    # Per-block byte budget: <= 4 MiB (VMEM-safe on v7x with double buffering),
    # >= 512 KiB, and aim for ~8+ grid steps on large inputs so both v7x
    # TensorCores and the DMA pipeline stay busy.
    block_bytes = int(min(4 * 1024 * 1024, max(512 * 1024, total_bytes // 8)))

    target_rows = max(sub, block_bytes // (lanes * itemsize))
    target_rows = (target_rows // sub) * sub          # dtype-aware sublane align

    if rows <= target_rows:
        # One full-extent block along rows (full-dim blocks are always legal).
        return lanes, rows, rows

    # Prefer a tile that divides rows exactly (no masked boundary block); if no
    # aligned divisor exists we fall back to a cdiv grid with a masked last block.
    tile_rows = target_rows
    t = target_rows
    while t >= sub:
        if rows % t == 0:
            tile_rows = t
            break
        t -= sub
    return lanes, rows, tile_rows


def _identity_copy_2d(x2d, rows: int, lanes: int, tile_rows: int):
    itemsize = np.dtype(x2d.dtype).itemsize
    grid = (pl.cdiv(rows, tile_rows),)
    return pl.pallas_call(
        _identity_kernel,
        out_shape=jax.ShapeDtypeStruct((rows, lanes), x2d.dtype),
        grid_spec=pltpu.PrefetchScalarGridSpec(
            num_scalar_prefetch=0,
            grid=grid,
            in_specs=[pl.BlockSpec((tile_rows, lanes), lambda i: (i, 0))],
            out_specs=pl.BlockSpec((tile_rows, lanes), lambda i: (i, 0)),
        ),
        # Identity: let the output reuse the input's HBM buffer (no second
        # allocation when the caller donates the input at the jit boundary).
        input_output_aliases={0: 0},
        compiler_params=pltpu.CompilerParams(
            dimension_semantics=("parallel",),
            vmem_limit_bytes=32 * 1024 * 1024,
        ),
        cost_estimate=pl.CostEstimate(
            flops=0,
            transcendentals=0,
            bytes_accessed=2 * rows * lanes * itemsize,
        ),
    )(x2d)


@functools.partial(jax.jit, donate_argnums=0)
def tensor_parameter_forward(x):
    """Pallas equivalent of Tensor_Parameter.forward (identity).

    The input is donated: the parameter takes ownership of the data, matching
    `self.Input.data = x` in the PyTorch module.
    """
    orig_shape = x.shape
    total = x.size

    # Present a lane-dense 2-D slab; pad the flat view to a multiple of 128
    # elements if needed (no-op for aligned sizes, decided at trace time).
    padded_total = ((total + 127) // 128) * 128
    x_flat = x.reshape(-1)
    if padded_total != total:
        x_flat = jnp.pad(x_flat, (0, padded_total - total))

    lanes, rows, tile_rows = _choose_tiling(padded_total, x.dtype)
    x2d = x_flat.reshape(rows, lanes)

    out2d = _identity_copy_2d(x2d, rows, lanes, tile_rows)

    out_flat = out2d.reshape(-1)
    if padded_total != total:
        out_flat = out_flat[:total]
    return out_flat.reshape(orig_shape)


class TensorParameterPallas:
    """Mirror of the PyTorch module: holds a parameter, forward is identity."""

    def __init__(self):
        # nn.Parameter(torch.zeros(1)) — deterministic init, overwritten in forward.
        # TODO(synk): requires_grad / autograd bookkeeping of nn.Parameter has no
        # Pallas equivalent; only the data semantics are reproduced.
        self.Input = jnp.zeros((1,), dtype=jnp.float32)

    def __call__(self, x):
        out = tensor_parameter_forward(x)   # self.Input.data = x
        self.Input = out
        return self.Input


if __name__ == "__main__":
    key = jax.random.PRNGKey(0)
    shape = (2, 4, 16, 16)  # NCHW: batch=2, channels=4, spatial=16x16
    x = jax.random.normal(key, shape, dtype=jnp.float32)
    # The forward donates its input buffer (identity in place); regenerate the
    # same deterministic values for the correctness check.
    x_check = jax.random.normal(key, shape, dtype=jnp.float32)

    module = TensorParameterPallas()
    out = jax.block_until_ready(module(x))

    assert out.shape == shape
    assert out.dtype == jnp.float32
    assert bool(jnp.allclose(out, x_check)), "identity forward mismatch"

    print("KERNEL_OK")
</pallas_src>

<mosaic_0001>
module attributes {stable_mosaic.version = 11 : i64} {
  func.func @_identity_kernel(%arg0: i32, %arg1: memref<1x2048xf32, #tpu.memory_space<vmem>>, %arg2: memref<1x2048xf32, #tpu.memory_space<vmem>>) attributes {dimension_semantics = [#tpu.dimension_semantics<parallel>], iteration_bounds = array<i64: 1>, scalar_prefetch = 0 : i64, scratch_operands = 0 : i64, tpu.core_type = #tpu.core_type<tc>, window_params = [{transform_indices = @transform_0, window_bounds = array<i64: 1, 2048>}, {transform_indices = @transform_1, window_bounds = array<i64: 1, 2048>}]} {
    %c0 = arith.constant 0 : index
    %c0_0 = arith.constant 0 : index
    %0 = vector.load %arg1[%c0, %c0_0] : memref<1x2048xf32, #tpu.memory_space<vmem>>, vector<1x2048xf32>
    %c0_1 = arith.constant 0 : index
    %c0_2 = arith.constant 0 : index
    %1 = vector.load %arg2[%c0_1, %c0_2] : memref<1x2048xf32, #tpu.memory_space<vmem>>, vector<1x2048xf32>
    tpu.vector_store %arg2[%c0_1, %c0_2], %0 {strides = array<i32>} : memref<1x2048xf32, #tpu.memory_space<vmem>>, vector<1x2048xf32>,
    return
  }
  func.func @transform_0(%arg0: i32) -> (i32, i32) {
    %c0_i32 = arith.constant 0 : i32
    %c0_i32_0 = arith.constant 0 : i32
    return %arg0, %c0_i32 : i32, i32
  }
  func.func @transform_1(%arg0: i32) -> (i32, i32) {
    %c0_i32 = arith.constant 0 : i32
    %c0_i32_0 = arith.constant 0 : i32
    return %arg0, %c0_i32 : i32, i32
  }
}

</mosaic_0001>

<llo_original>
// kernel: tensor_parameter_forward.1
$region0: #{tensor_parameter_forward.1}
  #allocation0 [shape = 'u32[]', space=smem, size = 0x4, offset = 0x4, fixed_abs, tag = 'smem constant byte address 0x4 - core index']
  #allocation1 [shape = 'u32[144,128]{1,0:T(1,128)}', space=vmem, size = 0x12000, scoped, tag = 'internal scratch']
  %s0 = inlined_call_operand.vmem [shape: f32[1,2048], index: 0, kind: input, shape index: {}, may-alias: {0,1}]
  %s1 = inlined_call_operand.vmem [shape: f32[1,2048], index: 1, kind: output, shape index: {}, may-alias: {0,1}]
  %s2 = sld [smem:[#allocation0]]
  $region14: #{tensor_parameter_forward.1} parent=0
    _
  %s4 = ssub.s32 1, %s2
  %s5 = scalar_select 0, %s4, %s2
  // Predicated region
  $region2: #{tensor_parameter_forward.1} parent=0 // pred_check
    _
  $region3: #{tensor_parameter_forward.1} parent=0 // pred_check_branch
    %7 = sbr.rel (0) target = $region5
  $region4: #{tensor_parameter_forward.1} parent=0 // pred_region
    _
  $region5: #{tensor_parameter_forward.1} parent=0 // pred_fallthru
    _
  %v8 = vld [vmem:[%s0] sm:$0xff]
  %v9 = vld [vmem:[%s0 + $0x8] sm:$0xff]
  %10 = vst [vmem:[%s1] sm:$0xff] %v8
  %11 = vst [vmem:[%s1 + $0x8] sm:$0xff] %v9
  // Predicated region
  $region6: #{tensor_parameter_forward.1} parent=0 // pred_check
    _
  $region7: #{tensor_parameter_forward.1} parent=0 // pred_check_branch
    %13 = sbr.rel (0) target = $region9
  $region8: #{tensor_parameter_forward.1} parent=0 // pred_region
    _
  $region9: #{tensor_parameter_forward.1} parent=0 // pred_fallthru
    _
  // Predicated region
  $region10: #{tensor_parameter_forward.1} parent=0 // pred_check
    _
  $region11: #{tensor_parameter_forward.1} parent=0 // pred_check_branch
    %15 = sbr.rel (0) target = $region13
  $region12: #{tensor_parameter_forward.1} parent=0 // pred_region
    _
  $region13: #{tensor_parameter_forward.1} parent=0 // pred_fallthru
    _

</llo_original>
